<compile_context>
chip_gen: v7x
topology: tpu7x:2x2x1
jax: 0.10.0
libtpu: 0.0.40
codegen_flags: <defaults>
</compile_context>

<pallas_src>
import math
import functools

import jax
import jax.numpy as jnp
import numpy as np
from jax.experimental import pallas as pl
from jax.experimental.pallas import tpu as pltpu


# ----------------------------------------------------------------------------
# small shared helpers
# ----------------------------------------------------------------------------
def _layer_norm(y, g, b, eps=1e-5):
    mu = jnp.mean(y, axis=-1, keepdims=True)
    var = jnp.mean(jnp.square(y - mu), axis=-1, keepdims=True)
    return (y - mu) * jax.lax.rsqrt(var + eps) * g + b


# ----------------------------------------------------------------------------
# Kernel 1: row-tiled fused linear + bias + residual add   y = x @ W + b + add
#           (used for the 250-token/video CLIP projection)
# ----------------------------------------------------------------------------
def _linear_add_kernel(x_ref, w_ref, b_ref, add_ref, o_ref):
    o_ref[...] = (
        jnp.dot(x_ref[...], w_ref[...], preferred_element_type=jnp.float32)
        + b_ref[...]
        + add_ref[...]
    )


def linear_add(x, w_bf16, b, add, row_tile=128):
    """x: (R, K) any float dtype, w_bf16: (K, D) bf16, b: (1, D), add: (R, D)."""
    R, K = x.shape
    D = w_bf16.shape[1]
    x = x.astype(jnp.bfloat16)           # halves input DMA bytes
    rt = row_tile if R >= row_tile else R
    return pl.pallas_call(
        _linear_add_kernel,
        out_shape=jax.ShapeDtypeStruct((R, D), jnp.float32),
        grid=(pl.cdiv(R, rt),),
        in_specs=[
            pl.BlockSpec((rt, K), lambda i: (i, 0)),
            pl.BlockSpec((K, D), lambda i: (0, 0)),
            pl.BlockSpec((1, D), lambda i: (0, 0)),
            pl.BlockSpec((rt, D), lambda i: (i, 0)),
        ],
        out_specs=pl.BlockSpec((rt, D), lambda i: (i, 0)),
        compiler_params=pltpu.CompilerParams(
            dimension_semantics=("parallel",)),
    )(x, w_bf16, b, add)


def ref_linear_add(x, w_bf16, b, add, row_tile=128):
    return (jnp.dot(x.astype(jnp.bfloat16), w_bf16,
                    preferred_element_type=jnp.float32) + b + add)


# ----------------------------------------------------------------------------
# Kernel 2: fused arc-face encoding
#           y = feats @ Wf + bf + bbox @ Wb + bb + add   (one tiny kernel)
# ----------------------------------------------------------------------------
def _face_encode_kernel(feat_ref, bbox_ref, wf_ref, bf_ref, wb_ref, bb_ref,
                        add_ref, o_ref):
    o_ref[...] = (
        jnp.dot(feat_ref[...], wf_ref[...], preferred_element_type=jnp.float32)
        + jnp.dot(bbox_ref[...], wb_ref[...], preferred_element_type=jnp.float32)
        + bf_ref[...] + bb_ref[...] + add_ref[...]
    )


def face_encode(feats, bbox, wf, bf, wb, bb, add):
    R = feats.shape[0]
    D = wf.shape[1]
    return pl.pallas_call(
        _face_encode_kernel,
        out_shape=jax.ShapeDtypeStruct((R, D), jnp.float32),
    )(feats.astype(jnp.bfloat16), bbox.astype(jnp.bfloat16),
      wf, bf, wb, bb, add)


def ref_face_encode(feats, bbox, wf, bf, wb, bb, add):
    return (jnp.dot(feats.astype(jnp.bfloat16), wf,
                    preferred_element_type=jnp.float32)
            + jnp.dot(bbox.astype(jnp.bfloat16), wb,
                      preferred_element_type=jnp.float32)
            + bf + bb + add)


# ----------------------------------------------------------------------------
# Kernel 3: full 2-layer TransformerEncoder (post-norm, ReLU, eval dropout)
#           grid = (batch,), "parallel".  Activations live in VMEM across
#           both layers; all layer weights passed as constant-index blocks.
# ----------------------------------------------------------------------------
_PER_LAYER = ('wq', 'bq', 'wkv', 'bkv', 'wo', 'bo',
              'w1', 'b1', 'w2', 'b2', 'g1', 'beta1', 'g2', 'beta2')


def _encoder_stack_kernel(x_ref, mask_ref, *rest, num_heads, n_layers):
    o_ref = rest[-1]
    wrefs = rest[:-1]                 # 14 * n_layers weight refs
    x = x_ref[0]                      # (S, D) f32 -- full sequence, this batch
    addmask = mask_ref[0]             # (1, S) additive key-padding mask
    D = x.shape[-1]
    hd = D // num_heads

    for l in range(n_layers):
        (wq, bq, wkv, bkv, wo, bo,
         w1, b1, w2, b2, g1, bt1, g2, bt2) = wrefs[14 * l:14 * (l + 1)]

        xb = x.astype(jnp.bfloat16)
        # Q (pre-scaled by 1/sqrt(hd)) and fused K/V projection for all tokens.
        q = jnp.dot(xb, wq[...], preferred_element_type=jnp.float32) + bq[...]
        kv = jnp.dot(xb, wkv[...], preferred_element_type=jnp.float32) + bkv[...]

        # Per-head attention; accumulate (p @ v_h) @ Wo_h directly into a
        # (S, D) f32 accumulator -- no lane concatenate of 16-wide heads.
        attn = jnp.zeros(x.shape, jnp.float32)
        for h in range(num_heads):
            lo, hi = h * hd, (h + 1) * hd
            qh = q[:, lo:hi].astype(jnp.bfloat16)              # (S, hd)
            kh = kv[:, lo:hi].astype(jnp.bfloat16)             # (S, hd)
            vh = kv[:, D + lo:D + hi].astype(jnp.bfloat16)     # (S, hd)
            s = jax.lax.dot_general(
                qh, kh, (((1,), (1,)), ((), ())),
                preferred_element_type=jnp.float32)            # (S, S)
            s = s + addmask                                    # broadcast rows
            s = s - jnp.max(s, axis=-1, keepdims=True)
            p = jnp.exp(s)
            p = p * pl.reciprocal(jnp.sum(p, axis=-1, keepdims=True),
                                  approx=True)
            ctx = jnp.dot(p.astype(jnp.bfloat16), vh,
                          preferred_element_type=jnp.float32)  # (S, hd)
            attn = attn + jnp.dot(ctx.astype(jnp.bfloat16), wo[lo:hi, :],
                                  preferred_element_type=jnp.float32)
        attn = attn + bo[...]

        x1 = _layer_norm(x + attn, g1[...], bt1[...])
        h1 = jnp.maximum(
            jnp.dot(x1.astype(jnp.bfloat16), w1[...],
                    preferred_element_type=jnp.float32) + b1[...], 0.0)
        h2 = jnp.dot(h1.astype(jnp.bfloat16), w2[...],
                     preferred_element_type=jnp.float32) + b2[...]
        x = _layer_norm(x1 + h2, g2[...], bt2[...])

    o_ref[0] = x


def transformer_encoder_stack(x, addmask, layer_params, num_heads=8):
    """x: (B, S, D) f32, addmask: (B, 1, S) additive mask, layer_params: list."""
    B, S, D = x.shape
    n_layers = len(layer_params)
    F = layer_params[0]['w1'].shape[1]

    def const_spec(shape):
        return pl.BlockSpec(shape, lambda b: (0, 0))

    shapes = {'wq': (D, D), 'bq': (1, D), 'wkv': (D, 2 * D), 'bkv': (1, 2 * D),
              'wo': (D, D), 'bo': (1, D), 'w1': (D, F), 'b1': (1, F),
              'w2': (F, D), 'b2': (1, D),
              'g1': (1, D), 'beta1': (1, D), 'g2': (1, D), 'beta2': (1, D)}

    in_specs = [
        pl.BlockSpec((1, S, D), lambda b: (b, 0, 0)),   # x (full sequence)
        pl.BlockSpec((1, 1, S), lambda b: (b, 0, 0)),   # additive mask
    ]
    args = [x, addmask]
    for lp in layer_params:
        for name in _PER_LAYER:
            in_specs.append(const_spec(shapes[name]))
            args.append(lp[name])

    return pl.pallas_call(
        functools.partial(_encoder_stack_kernel,
                          num_heads=num_heads, n_layers=n_layers),
        out_shape=jax.ShapeDtypeStruct((B, S, D), jnp.float32),
        grid=(B,),
        in_specs=in_specs,
        out_specs=pl.BlockSpec((1, S, D), lambda b: (b, 0, 0)),
        compiler_params=pltpu.CompilerParams(
            dimension_semantics=("parallel",),
            vmem_limit_bytes=32 * 1024 * 1024),
    )(*args)


def ref_transformer_encoder_layer(x, addmask, p, num_heads=8):
    """Pure-JAX reference with the SAME prepared params / bf16 matmul casts."""
    B, S, D = x.shape
    hd = D // num_heads
    xb = x.astype(jnp.bfloat16)
    q = jnp.einsum('bsd,df->bsf', xb, p['wq'],
                   preferred_element_type=jnp.float32) + p['bq']
    kv = jnp.einsum('bsd,df->bsf', xb, p['wkv'],
                    preferred_element_type=jnp.float32) + p['bkv']
    k, v = kv[..., :D], kv[..., D:]
    qh = q.reshape(B, S, num_heads, hd).astype(jnp.bfloat16)
    kh = k.reshape(B, S, num_heads, hd).astype(jnp.bfloat16)
    vh = v.reshape(B, S, num_heads, hd).astype(jnp.bfloat16)
    s = jnp.einsum('bqhd,bkhd->bhqk', qh, kh,
                   preferred_element_type=jnp.float32)
    s = s + addmask[:, :, None, :]
    a = jax.nn.softmax(s, axis=-1)
    ctx = jnp.einsum('bhqk,bkhd->bqhd', a.astype(jnp.bfloat16), vh,
                     preferred_element_type=jnp.float32).reshape(B, S, D)
    attn = jnp.einsum('bsd,df->bsf', ctx.astype(jnp.bfloat16), p['wo'],
                      preferred_element_type=jnp.float32) + p['bo']
    x1 = _layer_norm(x + attn, p['g1'], p['beta1'])
    h = jax.nn.relu(jnp.einsum('bsd,df->bsf', x1.astype(jnp.bfloat16), p['w1'],
                               preferred_element_type=jnp.float32) + p['b1'])
    h = jnp.einsum('bsf,fd->bsd', h.astype(jnp.bfloat16), p['w2'],
                   preferred_element_type=jnp.float32) + p['b2']
    return _layer_norm(x1 + h, p['g2'], p['beta2'])


def ref_transformer_encoder_stack(x, addmask, layer_params, num_heads=8):
    for lp in layer_params:
        x = ref_transformer_encoder_layer(x, addmask, lp, num_heads=num_heads)
    return x


# ----------------------------------------------------------------------------
# Parameter init (deterministic, synthetic) + one-time kernel prep
# ----------------------------------------------------------------------------
def init_params(key, *, model_dim=128, nvid=5, nsegments=50, n_types=4,
                n_clusters=400, ffn_dim=2048, n_layers=2):
    D = model_dim
    keys = iter(jax.random.split(key, 64))

    def nrm(shape, scale):
        return jax.random.normal(next(keys), shape, jnp.float32) * scale

    params = {
        'model_dim': D, 'nvid': nvid,
        'video_embed': nrm((nvid, D), 0.02),
        'segment_embed': nrm((nsegments, D), 0.02),
        'type_embed': nrm((n_types, D), 0.02),
        'arc_cluster_embed': nrm((n_clusters, D), 0.02),
        # Linear weights stored pre-transposed as (in, out): y = x @ W + b
        'clip_w': nrm((512, D), 512 ** -0.5), 'clip_b': nrm((1, D), 0.02),
        'face_w': nrm((512, D), 512 ** -0.5), 'face_b': nrm((1, D), 0.02),
        'bbox_w': nrm((4, D), 0.5), 'bbox_b': nrm((1, D), 0.02),
        'layers': [],
    }
    for _ in range(n_layers):
        params['layers'].append({
            'wq': nrm((D, D), D ** -0.5), 'bq': jnp.zeros((1, D), jnp.float32),
            'wk': nrm((D, D), D ** -0.5), 'bk': jnp.zeros((1, D), jnp.float32),
            'wv': nrm((D, D), D ** -0.5), 'bv': jnp.zeros((1, D), jnp.float32),
            'wo': nrm((D, D), D ** -0.5), 'bo': jnp.zeros((1, D), jnp.float32),
            'w1': nrm((D, ffn_dim), D ** -0.5),
            'b1': jnp.zeros((1, ffn_dim), jnp.float32),
            'w2': nrm((ffn_dim, D), ffn_dim ** -0.5),
            'b2': jnp.zeros((1, D), jnp.float32),
            'g1': jnp.ones((1, D), jnp.float32), 'beta1': jnp.zeros((1, D), jnp.float32),
            'g2': jnp.ones((1, D), jnp.float32), 'beta2': jnp.zeros((1, D), jnp.float32),
        })
    return params


def prepare_encoder_params(params, num_heads=8):
    """Pre-cast weights to bf16 once, fuse K/V weights, fold 1/sqrt(hd) into Q."""
    D = params['model_dim']
    hd = D // num_heads
    scale = 1.0 / math.sqrt(hd)
    bf16 = jnp.bfloat16

    p = dict(params)
    p['clip_w'] = params['clip_w'].astype(bf16)
    p['face_w'] = params['face_w'].astype(bf16)
    p['bbox_w'] = params['bbox_w'].astype(bf16)
    layers = []
    for lp in params['layers']:
        layers.append({
            'wq': (lp['wq'] * scale).astype(bf16),
            'bq': lp['bq'] * scale,
            'wkv': jnp.concatenate([lp['wk'], lp['wv']], axis=1).astype(bf16),
            'bkv': jnp.concatenate([lp['bk'], lp['bv']], axis=1),
            'wo': lp['wo'].astype(bf16), 'bo': lp['bo'],
            'w1': lp['w1'].astype(bf16), 'b1': lp['b1'],
            'w2': lp['w2'].astype(bf16), 'b2': lp['b2'],
            'g1': lp['g1'], 'beta1': lp['beta1'],
            'g2': lp['g2'], 'beta2': lp['beta2'],
        })
    p['layers'] = layers
    return p


# ----------------------------------------------------------------------------
# FTV_encoder.forward (run_type='joint': type_embed has 4 entries, 400 clusters)
# ----------------------------------------------------------------------------
def ftv_encoder_forward(params, arc_face, video_clip, fc, text_embeddings,
                        slot, slot_sent, *, use_pallas=True):
    lin = linear_add if use_pallas else ref_linear_add
    face_enc = face_encode if use_pallas else ref_face_encode
    encoder = (transformer_encoder_stack if use_pallas
               else ref_transformer_encoder_stack)

    B = arc_face['feats'].shape[0]
    D = params['model_dim']
    nvid = params['nvid']

    video_embed_tbl = params['video_embed']
    seg_tbl = params['segment_embed']
    type_tbl = params['type_embed']
    clus_tbl = params['arc_cluster_embed']

    # ---- text tokens -------------------------------------------------------
    video_slots = jnp.where(slot['slots'] == -1, 0, slot['slots'])
    text_masks = slot['slot_masks'][:, 1:]
    text_video_ids = video_embed_tbl[video_slots]
    text_type_embedding = type_tbl[jnp.zeros_like(video_slots)]
    text_embeddings = text_embeddings + text_video_ids + text_type_embedding

    # ---- video clip tokens (5 videos x 50 segments = 250) ------------------
    clip_segments = video_clip['segments'].reshape(B, -1)
    T_clip = clip_segments.shape[1]
    video_clip_e_t = seg_tbl[clip_segments]
    video_clip_ids = jnp.tile(jnp.repeat(jnp.arange(5), 50)[None, :], (B, 1))
    video_clip_e_i = video_embed_tbl[video_clip_ids]
    video_clip_type_e = type_tbl[jnp.full_like(video_clip_ids, 3)]
    clip_add = video_clip_e_i + video_clip_e_t + video_clip_type_e
    video_clip_embeddings = lin(
        video_clip['feats'].reshape(B * T_clip, -1),
        params['clip_w'], params['clip_b'],
        clip_add.reshape(B * T_clip, D)).reshape(B, T_clip, D)
    clip_masks = video_clip['masks'].reshape(B, -1)

    # ---- arc-face tokens (fused bbox-linear + face-linear + embedding sum) --
    af_seg = arc_face['segments'].astype(jnp.int32)
    af_vid = arc_face['vid_ids'].astype(jnp.int32)
    af_clu = arc_face['clusters'].astype(jnp.int32)
    n_face = af_vid.shape[1]
    af_add = (video_embed_tbl[af_vid] + seg_tbl[af_seg]
              + type_tbl[jnp.full_like(af_vid, 2)] + clus_tbl[af_clu])
    arc_face_embeddings = face_enc(
        arc_face['feats'].reshape(B * n_face, -1),
        arc_face['bbox'].reshape(B * n_face, 4),
        params['face_w'], params['face_b'],
        params['bbox_w'], params['bbox_b'],
        af_add.reshape(B * n_face, D)).reshape(B, n_face, D)

    # ---- video (fc) tokens (nvid*5 = 25) ------------------------------------
    video_segments = jnp.tile(jnp.tile(jnp.arange(5), 5)[None, :], (B, 1))
    video_ids = jnp.tile(jnp.repeat(jnp.arange(5), 5)[None, :], (B, 1))
    video_embeddings = (fc['embedding'] + video_embed_tbl[video_ids]
                        + seg_tbl[video_segments]
                        + type_tbl[jnp.full_like(video_ids, 1)])
    pos = jnp.arange(nvid * 5)[None, :]
    video_masks = (pos < (slot_sent['sent_num'][:, None] * 5)).astype(jnp.float32)

    # ---- concatenate + transformer encoder ----------------------------------
    encoder_input = jnp.concatenate(
        (text_embeddings, video_embeddings, arc_face_embeddings,
         video_clip_embeddings), axis=1)
    input_masks = jnp.concatenate(
        (text_masks, video_masks, arc_face['masks'], clip_masks), axis=1)
    key_padding = jnp.logical_not(input_masks.astype(bool))   # True = ignore
    addmask = jnp.where(key_padding, -1e9, 0.0).astype(jnp.float32)[:, None, :]

    x = encoder(encoder_input, addmask, params['layers'], num_heads=8)

    encoder_output = jnp.transpose(x, (1, 0, 2))   # (S, B, D), matches PyTorch
    return encoder_output, key_padding


# ----------------------------------------------------------------------------
if __name__ == "__main__":
    B, D, NVID, NSEG = 2, 128, 5, 50
    N_TEXT, N_FACE = 37, 8        # total sequence S = 37 + 25 + 8 + 250 = 320

    root = jax.random.PRNGKey(0)
    ks = jax.random.split(root, 20)
    raw_params = init_params(ks[0], model_dim=D, nvid=NVID, nsegments=NSEG)
    params = prepare_encoder_params(raw_params, num_heads=8)

    text_embeddings = jax.random.normal(ks[1], (B, N_TEXT, D), jnp.float32)
    slot = {
        'slots': jax.random.randint(ks[2], (B, N_TEXT), -1, NVID),
        'slot_masks': (jax.random.uniform(ks[3], (B, N_TEXT + 1)) > 0.2
                       ).astype(jnp.float32),
    }
    video_clip = {
        'feats': jax.random.normal(ks[4], (B, 250, 512), jnp.float32),
        'segments': jax.random.randint(ks[5], (B, 5, 50), 0, NSEG),
        'masks': (jax.random.uniform(ks[6], (B, 5, 50)) > 0.3).astype(jnp.float32),
    }
    arc_face = {
        'feats': jax.random.normal(ks[7], (B, N_FACE, 512), jnp.float32),
        'bbox': jax.random.uniform(ks[8], (B, N_FACE, 4), jnp.float32),
        'segments': jax.random.randint(ks[9], (B, N_FACE), 0, NSEG),
        'vid_ids': jax.random.randint(ks[10], (B, N_FACE), 0, NVID),
        'clusters': jax.random.randint(ks[11], (B, N_FACE), 0, 400),
        'masks': (jax.random.uniform(ks[12], (B, N_FACE)) > 0.3).astype(jnp.float32),
    }
    fc = {'embedding': jax.random.normal(ks[13], (B, NVID * 5, D), jnp.float32)}
    slot_sent = {'sent_num': jnp.array([3, 5], dtype=jnp.int32)}

    out, masks = ftv_encoder_forward(
        params, arc_face, video_clip, fc, text_embeddings, slot, slot_sent,
        use_pallas=True)
    jax.block_until_ready(out)

    # cross-check against a pure-JAX reference of the same (bf16-matmul) math
    ref_out, ref_masks = ftv_encoder_forward(
        params, arc_face, video_clip, fc, text_embeddings, slot, slot_sent,
        use_pallas=False)
    np.testing.assert_allclose(np.asarray(out), np.asarray(ref_out),
                               rtol=2e-2, atol=2e-2)
    np.testing.assert_array_equal(np.asarray(masks), np.asarray(ref_masks))

    print("KERNEL_OK")
</pallas_src>

<mosaic_0001>
module attributes {stable_mosaic.version = 11 : i64} {
  func.func @_linear_add_kernel(%arg0: i32, %arg1: memref<128x512xbf16, #tpu.memory_space<vmem>>, %arg2: memref<512x128xbf16, #tpu.memory_space<vmem>>, %arg3: memref<1x128xf32, #tpu.memory_space<vmem>>, %arg4: memref<128x128xf32, #tpu.memory_space<vmem>>, %arg5: memref<128x128xf32, #tpu.memory_space<vmem>>) attributes {dimension_semantics = [#tpu.dimension_semantics<parallel>], iteration_bounds = array<i64: 4>, scalar_prefetch = 0 : i64, scratch_operands = 0 : i64, tpu.core_type = #tpu.core_type<tc>, window_params = [{transform_indices = @transform_0, window_bounds = array<i64: 128, 512>}, {pipeline_mode = #tpu.pipeline_mode<synchronous>, transform_indices = @transform_1, window_bounds = array<i64: 512, 128>}, {pipeline_mode = #tpu.pipeline_mode<synchronous>, transform_indices = @transform_2, window_bounds = array<i64: 1, 128>}, {transform_indices = @transform_3, window_bounds = array<i64: 128, 128>}, {transform_indices = @transform_4, window_bounds = array<i64: 128, 128>}]} {
    %c0 = arith.constant 0 : index
    %c0_0 = arith.constant 0 : index
    %0 = vector.load %arg1[%c0, %c0_0] : memref<128x512xbf16, #tpu.memory_space<vmem>>, vector<128x512xbf16>
    %c0_1 = arith.constant 0 : index
    %c0_2 = arith.constant 0 : index
    %1 = vector.load %arg2[%c0_1, %c0_2] : memref<512x128xbf16, #tpu.memory_space<vmem>>, vector<512x128xbf16>
    %cst = arith.constant dense<0.000000e+00> : vector<128x128xf32>
    %2 = tpu.matmul %0, %1, %cst {dimension_numbers = #tpu.dot_dimension_numbers<[1], [0], [0], [1], [0, 0, 1, 1], [], []>} : vector<128x512xbf16>, vector<512x128xbf16>, vector<128x128xf32> -> vector<128x128xf32>
    %c0_3 = arith.constant 0 : index
    %c0_4 = arith.constant 0 : index
    %3 = vector.load %arg3[%c0_3, %c0_4] : memref<1x128xf32, #tpu.memory_space<vmem>>, vector<1x128xf32>
    %4 = vector.broadcast %3 : vector<1x128xf32> to vector<128x128xf32>
    %5 = arith.addf %2, %4 : vector<128x128xf32>
    %c0_5 = arith.constant 0 : index
    %c0_6 = arith.constant 0 : index
    %6 = vector.load %arg4[%c0_5, %c0_6] : memref<128x128xf32, #tpu.memory_space<vmem>>, vector<128x128xf32>
    %7 = arith.addf %5, %6 : vector<128x128xf32>
    %c0_7 = arith.constant 0 : index
    %c0_8 = arith.constant 0 : index
    %8 = vector.load %arg5[%c0_7, %c0_8] : memref<128x128xf32, #tpu.memory_space<vmem>>, vector<128x128xf32>
    tpu.vector_store %arg5[%c0_7, %c0_8], %7 {strides = array<i32>} : memref<128x128xf32, #tpu.memory_space<vmem>>, vector<128x128xf32>,
    return
  }
  func.func @transform_0(%arg0: i32) -> (i32, i32) {
    %c0_i32 = arith.constant 0 : i32
    %c0_i32_0 = arith.constant 0 : i32
    return %arg0, %c0_i32 : i32, i32
  }
  func.func @transform_1(%arg0: i32) -> (i32, i32) {
    %c0_i32 = arith.constant 0 : i32
    %c0_i32_0 = arith.constant 0 : i32
    %c0_i32_1 = arith.constant 0 : i32
    return %c0_i32, %c0_i32_0 : i32, i32
  }
  func.func @transform_2(%arg0: i32) -> (i32, i32) {
    %c0_i32 = arith.constant 0 : i32
    %c0_i32_0 = arith.constant 0 : i32
    %c0_i32_1 = arith.constant 0 : i32
    return %c0_i32, %c0_i32_0 : i32, i32
  }
  func.func @transform_3(%arg0: i32) -> (i32, i32) {
    %c0_i32 = arith.constant 0 : i32
    %c0_i32_0 = arith.constant 0 : i32
    return %arg0, %c0_i32 : i32, i32
  }
  func.func @transform_4(%arg0: i32) -> (i32, i32) {
    %c0_i32 = arith.constant 0 : i32
    %c0_i32_0 = arith.constant 0 : i32
    return %arg0, %c0_i32 : i32, i32
  }
}

</mosaic_0001>

<llo_original>
// kernel: tpu_custom_call.1
$region0: #{tpu_custom_call.1}
  #allocation0 [shape = 'u32[]', space=smem, size = 0x4, offset = 0x4, fixed_abs, tag = 'smem constant byte address 0x4 - core index']
  #allocation1 [shape = 'u32[144,128]{1,0:T(1,128)}', space=vmem, size = 0x12000, scoped, tag = 'internal scratch']
  %s0 = inlined_call_operand.hbm [shape: bf16[500,512], index: 0, kind: input, shape index: {}]
  %s1 = inlined_call_operand.hbm [shape: bf16[512,128], index: 1, kind: input, shape index: {}]
  %s2 = inlined_call_operand.vmem [shape: f32[1,128], index: 2, kind: input, shape index: {}]
  %s3 = inlined_call_operand.hbm [shape: f32[500,128], index: 3, kind: input, shape index: {}]
  %s4 = inlined_call_operand.hbm [shape: f32[500,128], index: 4, kind: output, shape index: {}]
  %s5 = sld [smem:[#allocation0]]
  $region61: #{tpu_custom_call.1} parent=0
    _
  %s7 = ssub.s32 1, %s5
  %s8 = scalar_select 0, %s7, %s5
  $region1: #{tpu_custom_call.1} parent=0
    #allocation2 [shape = 'u8[262144]{0}', space=vmem, size = 0x40000, scoped, tag = 'input window, operand 0']
    #allocation3 [shape = 's32[2]{0}', space=sflag, size = 0x8, scoped, tag = 'scoped memory for tpu_custom_call.1']
    #allocation4 [shape = 's32[2]{0}', space=sflag, size = 0x8, scoped, tag = 'scoped memory for tpu_custom_call.1']
    #allocation5 [shape = 'u8[131072]{0}', space=vmem, size = 0x20000, scoped, tag = 'input window, operand 1, single buffered']
    #allocation6 [shape = 's32[1]{0}', space=sflag, size = 0x4, scoped, tag = 'scoped memory for tpu_custom_call.1']
    #allocation7 [shape = 'u8[131072]{0}', space=vmem, size = 0x20000, scoped, tag = 'input window, operand 3']
    #allocation8 [shape = 'u8[131072]{0}', space=vmem, size = 0x20000, scoped, tag = 'output window, operand 0']
    %9 = vsyncpa [#allocation3], 0
    %s10 = scalar_lea.sflag [#allocation3], 1
    %11 = vsyncpa %s10, 0
    %12 = vsyncpa [#allocation6], 0
    %13 = vsyncpa [#allocation4], 0
    %s14 = scalar_lea.sflag [#allocation4], 1
    %15 = vsyncpa %s14, 0
    loop: start=0, step=1, limit=6
    $region2: #{tpu_custom_call.1} parent=1 // loop_pre_header
      _
    $region3: #{tpu_custom_call.1} parent=1 // loop_header
      %s17 = sphi 0, %s21
      %p18 = scmp.ge.s32.totalorder %s17, 6
      %s27 = sphi 0, %s29
      %s30 = sphi 0, %s27
      %s31 = sphi 0, %s30
      %s47 = sphi 0, %s31
      %s51 = sphi 0, %s51
      %s53 = sphi 0, %s51
      %s54 = sphi 0, %s53
      %s68 = sphi 0, %s54
      %s72 = sphi 0, %s72
      %s74 = sphi 0, %s72
      %s75 = sphi 0, %s74
      %s89 = sphi 0, %s75
      %s95 = sphi 0, %s97
      %s98 = sphi 0, %s95
      %s99 = sphi 0, %s98
      %s115 = sphi 0, %s99
      %s121 = sphi 0, %s123
      %s124 = sphi 0, %s121
      %s125 = sphi 0, %s124
      %s141 = sphi 0, %s125
    $region4: #{tpu_custom_call.1} parent=1 // loop_header_branch
      %20 = sbr.rel (%p18) target = $region8
    $region5: #{tpu_custom_call.1} parent=1 // loop_body
      %s22 = ssub.s32 %s17, 1
      %s23 = ssub.s32 %s17, 2
      %s24 = sadd.s32 %s17, 1
      %s25 = ssub.s32 %s17, %s24
      %p26 = scmp.eq.s32.totalorder %s25, 0
      %s28 = sadd.s32 %s27, 1
      %s29 = scalar_select %p26, %s27, %s28
      %p32 = pneg %p26
      %p33 = scmp.eq.s32.totalorder %s17, 3
      %p34 = por %p32, %p33
      %p35 = scmp.ne.s32.totalorder %s27, %s30
      %p36 = scmp.eq.s32.totalorder %s17, 0
      %p37 = por %p35, %p36
      %p38 = scmp.ne.s32.totalorder %s27, %s30
      %p39 = scmp.eq.s32.totalorder %s22, 3
      %p40 = por %p38, %p39
      %p41 = scmp.ne.s32.totalorder %s30, %s31
      %p42 = scmp.eq.s32.totalorder %s22, 0
      %p43 = por %p41, %p42
      %p44 = scmp.ne.s32.totalorder %s30, %s31
      %p45 = scmp.eq.s32.totalorder %s23, 3
      %p46 = por %p44, %p45
      %p48 = scmp.ne.s32.totalorder %s31, %s47
      %p49 = scmp.eq.s32.totalorder %s23, 0
      %p50 = por %p48, %p49
      %s52 = sadd.s32 %s51, 1
      %p55 = scmp.eq.s32.totalorder %s17, 3
      %p56 = scmp.ne.s32.totalorder %s51, %s53
      %p57 = scmp.eq.s32.totalorder %s17, 0
      %p58 = por %p56, %p57
      %p59 = scmp.ne.s32.totalorder %s51, %s53
      %p60 = scmp.eq.s32.totalorder %s22, 3
      %p61 = por %p59, %p60
      %p62 = scmp.ne.s32.totalorder %s53, %s54
      %p63 = scmp.eq.s32.totalorder %s22, 0
      %p64 = por %p62, %p63
      %p65 = scmp.ne.s32.totalorder %s53, %s54
      %p66 = scmp.eq.s32.totalorder %s23, 3
      %p67 = por %p65, %p66
      %p69 = scmp.ne.s32.totalorder %s54, %s68
      %p70 = scmp.eq.s32.totalorder %s23, 0
      %p71 = por %p69, %p70
      %s73 = sadd.s32 %s72, 1
      %p76 = scmp.eq.s32.totalorder %s17, 3
      %p77 = scmp.ne.s32.totalorder %s72, %s74
      %p78 = scmp.eq.s32.totalorder %s17, 0
      %p79 = por %p77, %p78
      %p80 = scmp.ne.s32.totalorder %s72, %s74
      %p81 = scmp.eq.s32.totalorder %s22, 3
      %p82 = por %p80, %p81
      %p83 = scmp.ne.s32.totalorder %s74, %s75
      %p84 = scmp.eq.s32.totalorder %s22, 0
      %p85 = por %p83, %p84
      %p86 = scmp.ne.s32.totalorder %s74, %s75
      %p87 = scmp.eq.s32.totalorder %s23, 3
      %p88 = por %p86, %p87
      %p90 = scmp.ne.s32.totalorder %s75, %s89
      %p91 = scmp.eq.s32.totalorder %s23, 0
      %p92 = por %p90, %p91
      %s93 = ssub.s32 %s17, %s24
      %p94 = scmp.eq.s32.totalorder %s93, 0
      %s96 = sadd.s32 %s95, 1
      %s97 = scalar_select %p94, %s95, %s96
      %p100 = pneg %p94
      %p101 = scmp.eq.s32.totalorder %s17, 3
      %p102 = por %p100, %p101
      %p103 = scmp.ne.s32.totalorder %s95, %s98
      %p104 = scmp.eq.s32.totalorder %s17, 0
      %p105 = por %p103, %p104
      %p106 = scmp.ne.s32.totalorder %s95, %s98
      %p107 = scmp.eq.s32.totalorder %s22, 3
      %p108 = por %p106, %p107
      %p109 = scmp.ne.s32.totalorder %s98, %s99
      %p110 = scmp.eq.s32.totalorder %s22, 0
      %p111 = por %p109, %p110
      %p112 = scmp.ne.s32.totalorder %s98, %s99
      %p113 = scmp.eq.s32.totalorder %s23, 3
      %p114 = por %p112, %p113
      %p116 = scmp.ne.s32.totalorder %s99, %s115
      %p117 = scmp.eq.s32.totalorder %s23, 0
      %p118 = por %p116, %p117
      %s119 = ssub.s32 %s17, %s24
      %p120 = scmp.eq.s32.totalorder %s119, 0
      %s122 = sadd.s32 %s121, 1
      %s123 = scalar_select %p120, %s121, %s122
      %p126 = pneg %p120
      %p127 = scmp.eq.s32.totalorder %s17, 3
      %p128 = por %p126, %p127
      %p129 = scmp.ne.s32.totalorder %s121, %s124
      %p130 = scmp.eq.s32.totalorder %s17, 0
      %p131 = por %p129, %p130
      %p132 = scmp.ne.s32.totalorder %s121, %s124
      %p133 = scmp.eq.s32.totalorder %s22, 3
      %p134 = por %p132, %p133
      %p135 = scmp.ne.s32.totalorder %s124, %s125
      %p136 = scmp.eq.s32.totalorder %s22, 0
      %p137 = por %p135, %p136
      %p138 = scmp.ne.s32.totalorder %s124, %s125
      %p139 = scmp.eq.s32.totalorder %s23, 3
      %p140 = por %p138, %p139
      %p142 = scmp.ne.s32.totalorder %s125, %s141
      %p143 = scmp.eq.s32.totalorder %s23, 0
      %p144 = por %p142, %p143
      %p145 = scmp.le.s32.totalorder 1, %s17
      %p146 = scmp.lt.s32.totalorder %s17, 5
      %p147 = pnand %p145, %p146
      %p148 = pneg %p147
      // Predicated region
      $region9: #{tpu_custom_call.1} parent=5 // pred_check
        _
      $region10: #{tpu_custom_call.1} parent=5 // pred_check_branch
        %150 = sbr.rel (%p147) target = $region12
      $region11: #{tpu_custom_call.1} parent=5 // pred_region
        %s151 = ssub.s32 %s17, 1
        // Predicated region
        $region13: #{tpu_custom_call.1} parent=11 // pred_check
          %p152 = pneg %p64
        $region14: #{tpu_custom_call.1} parent=11 // pred_check_branch
          %154 = sbr.rel (%p152) target = $region16
        $region15: #{tpu_custom_call.1} parent=11 // pred_region
          %s156 = ssub.s32 4096, 4096
          %157 = vsyncadd [#allocation6], %s156
          %s158 = sshll.u32 [#allocation5], 4
          %s159 = int_to_ptr.vmem [resolvable:$true] %s158
          %164 = dma.hbm_to_vmem [thread:$0]  %s1, 4096, %s159, [#allocation6], 64, 64, 4
        $region16: #{tpu_custom_call.1} parent=11 // pred_fallthru
          _
        // Predicated region
        $region17: #{tpu_custom_call.1} parent=11 // pred_check
          %p165 = pneg %p85
        $region18: #{tpu_custom_call.1} parent=11 // pred_check_branch
          %167 = sbr.rel (%p165) target = $region20
        $region19: #{tpu_custom_call.1} parent=11 // pred_region
          _
        $region20: #{tpu_custom_call.1} parent=11 // pred_fallthru
          _
      $region12: #{tpu_custom_call.1} parent=5 // pred_fallthru
        _
      %p168 = scmp.lt.s32.totalorder %s17, 4
      // Predicated region
      $region21: #{tpu_custom_call.1} parent=5 // pred_check
        %p169 = pneg %p168
      $region22: #{tpu_custom_call.1} parent=5 // pred_check_branch
        %171 = sbr.rel (%p169) target = $region24
      $region23: #{tpu_custom_call.1} parent=5 // pred_region
        // Predicated region
        $region25: #{tpu_custom_call.1} parent=23 // pred_check
          %p172 = pneg %p37
        $region26: #{tpu_custom_call.1} parent=23 // pred_check_branch
          %174 = sbr.rel (%p172) target = $region28
        $region27: #{tpu_custom_call.1} parent=23 // pred_region
          %s175 = sand.u32 %s17, 1
          %s176 = scalar_lea.sflag [#allocation3], %s175
          %s177 = sand.u32 %s27, 1
          %s178 = smul.addr %s177, 256
          %s179 = scalar_lea.vmem [#allocation2], %s178
          %s180 = smul.u32 16, %s17
          %s181 = ssub.s32 63, %s180
          %p182 = scmp.lt.s32.totalorder %s181, 16
          %s183 = scalar_select %p182, %s181, 16
          %s184 = smul.u32 64, %s183
          %s185 = smul.u32 %s184, 4
          %s187 = ssub.s32 4096, %s185
          %188 = vsyncadd %s176, %s187
          %p189 = scmp.ne.s32.totalorder 0, %s185
          %s190 = smul.addr %s180, 4
          %s191 = smul.addr %s190, 64
          %s192 = scalar_lea.hbm %s0, %s191
          %s193 = smul.u32 16, %s183
          %s194 = sshll.u32 %s179, 4
          %s195 = int_to_ptr.vmem [resolvable:$true] %s194
          %s196 = sshll.u32 %s193, 4
          %200 = dma.hbm_to_vmem [thread:$0]  (%p189), %s192, %s196, %s195, %s176, 256, 256, 16
        $region28: #{tpu_custom_call.1} parent=23 // pred_fallthru
          _
        // Predicated region
        $region29: #{tpu_custom_call.1} parent=23 // pred_check
          %p201 = pneg %p105
        $region30: #{tpu_custom_call.1} parent=23 // pred_check_branch
          %203 = sbr.rel (%p201) target = $region32
        $region31: #{tpu_custom_call.1} parent=23 // pred_region
          %s204 = sand.u32 %s17, 1
          %s205 = scalar_lea.sflag [#allocation3], %s204
          %s206 = sand.u32 %s95, 1
          %s207 = smul.addr %s206, 128
          %s208 = scalar_lea.vmem [#allocation7], %s207
          %s209 = smul.u32 16, %s17
          %s210 = ssub.s32 63, %s209
          %p211 = scmp.lt.s32.totalorder %s210, 16
          %s212 = scalar_select %p211, %s210, 16
          %s213 = smul.u32 128, %s212
          %s215 = ssub.s32 2048, %s213
          %216 = vsyncadd %s205, %s215
          %p217 = scmp.ne.s32.totalorder 0, %s213
          %s218 = smul.addr %s209, 128
          %s219 = scalar_lea.hbm %s3, %s218
          %s220 = smul.u32 8, %s212
          %s221 = sshll.u32 %s208, 4
          %s222 = int_to_ptr.vmem [resolvable:$true] %s221
          %s223 = sshll.u32 %s220, 4
          %227 = dma.hbm_to_vmem [thread:$0]  (%p217), %s219, %s223, %s222, %s205, 128, 128, 8
        $region32: #{tpu_custom_call.1} parent=23 // pred_fallthru
          _
      $region24: #{tpu_custom_call.1} parent=5 // pred_fallthru
        _
      %p228 = scmp.le.s32.totalorder 1, %s17
      %p229 = scmp.lt.s32.totalorder %s17, 5
      %p230 = pnand %p228, %p229
      %p231 = pneg %p230
      // Predicated region
      $region33: #{tpu_custom_call.1} parent=5 // pred_check
        _
      $region34: #{tpu_custom_call.1} parent=5 // pred_check_branch
        %233 = sbr.rel (%p230) target = $region36
      $region35: #{tpu_custom_call.1} parent=5 // pred_region
        %s234 = ssub.s32 %s17, 1
        %s235 = sand.u32 %s22, 1
        %s236 = scalar_lea.sflag [#allocation3], %s235
        %s237 = sand.u32 %s30, 1
        %s238 = smul.addr %s237, 256
        %s239 = scalar_lea.vmem [#allocation2], %s238
        // Predicated region
        $region37: #{tpu_custom_call.1} parent=35 // pred_check
          %p240 = pneg %p43
        $region38: #{tpu_custom_call.1} parent=35 // pred_check_branch
          %242 = sbr.rel (%p240) target = $region40
        $region39: #{tpu_custom_call.1} parent=35 // pred_region
          %243 = dma.done %s236, 4096
        $region40: #{tpu_custom_call.1} parent=35 // pred_fallthru
          _
        // Predicated region
        $region41: #{tpu_custom_call.1} parent=35 // pred_check
          %p244 = pneg %p64
        $region42: #{tpu_custom_call.1} parent=35 // pred_check_branch
          %246 = sbr.rel (%p244) target = $region44
        $region43: #{tpu_custom_call.1} parent=35 // pred_region
          %247 = dma.done [#allocation6], 4096
        $region44: #{tpu_custom_call.1} parent=35 // pred_fallthru
          _
        %s248 = sand.u32 %s22, 1
        %s249 = scalar_lea.sflag [#allocation3], %s248
        %s250 = sand.u32 %s98, 1
        %s251 = smul.addr %s250, 128
        %s252 = scalar_lea.vmem [#allocation7], %s251
        // Predicated region
        $region45: #{tpu_custom_call.1} parent=35 // pred_check
          %p253 = pneg %p111
        $region46: #{tpu_custom_call.1} parent=35 // pred_check_branch
          %255 = sbr.rel (%p253) target = $region48
        $region47: #{tpu_custom_call.1} parent=35 // pred_region
          %256 = dma.done %s249, 2048
        $region48: #{tpu_custom_call.1} parent=35 // pred_fallthru
          _
        %s257 = sand.u32 %s22, 1
        %s258 = scalar_lea.sflag [#allocation3], %s257
        %s259 = sand.u32 %s30, 1
        %s260 = smul.addr %s259, 256
        %s261 = scalar_lea.vmem [#allocation2], %s260
        %p262 = pneg %p43
        %p263 = pneg %p40
        %p264 = pneg %p64
        %p265 = pneg %p61
        %p266 = pneg %p85
        %p267 = pneg %p82
        %s268 = sand.u32 %s22, 1
        %s269 = scalar_lea.sflag [#allocation3], %s268
        %s270 = sand.u32 %s98, 1
        %s271 = smul.addr %s270, 128
        %s272 = scalar_lea.vmem [#allocation7], %s271
        %p273 = pneg %p111
        %p274 = pneg %p108
        %p275 = pneg %p137
        %p276 = pneg %p134
        %s277 = sand.u32 %s124, 1
        %s278 = scalar_lea.sflag [#allocation4], %s277
        %s279 = sand.u32 %s124, 1
        %s280 = smul.addr %s279, 128
        %s281 = scalar_lea.vmem [#allocation8], %s280
        %s282 = smul.u32 16, %s22
        %s283 = ssub.s32 63, %s282
        %p284 = scmp.lt.s32.totalorder %s283, 16
        %s285 = scalar_select %p284, %s283, 16
        %s286 = smul.u32 64, %s285
        %s287 = smul.u32 %s286, 4
        %s288 = smul.u32 16, %s22
        %s289 = ssub.s32 63, %s288
        %p290 = scmp.lt.s32.totalorder %s289, 16
        %s291 = scalar_select %p290, %s289, 16
        %s292 = smul.u32 128, %s291
        %s293 = smul.u32 16, %s22
        %s294 = ssub.s32 63, %s293
        %p295 = scmp.lt.s32.totalorder %s294, 16
        %s296 = scalar_select %p295, %s294, 16
        %s297 = smul.u32 128, %s296
        %v299 = vld [vmem:[%s239] sm:$0xff]
        %v300 = vld [vmem:[%s239 + $0x8] sm:$0xff]
        %v301 = vld [vmem:[%s239 + $0x10] sm:$0xff]
        %v302 = vld [vmem:[%s239 + $0x18] sm:$0xff]
        %v303 = vld [vmem:[%s239 + $0x20] sm:$0xff]
        %v304 = vld [vmem:[%s239 + $0x28] sm:$0xff]
        %v305 = vld [vmem:[%s239 + $0x30] sm:$0xff]
        %v306 = vld [vmem:[%s239 + $0x38] sm:$0xff]
        %v307 = vld [vmem:[%s239 + $0x40] sm:$0xff]
        %v308 = vld [vmem:[%s239 + $0x48] sm:$0xff]
        %v309 = vld [vmem:[%s239 + $0x50] sm:$0xff]
        %v310 = vld [vmem:[%s239 + $0x58] sm:$0xff]
        %v311 = vld [vmem:[%s239 + $0x60] sm:$0xff]
        %v312 = vld [vmem:[%s239 + $0x68] sm:$0xff]
        %v313 = vld [vmem:[%s239 + $0x70] sm:$0xff]
        %v314 = vld [vmem:[%s239 + $0x78] sm:$0xff]
        %v315 = vld [vmem:[%s239 + $0x80] sm:$0xff]
        %v316 = vld [vmem:[%s239 + $0x88] sm:$0xff]
        %v317 = vld [vmem:[%s239 + $0x90] sm:$0xff]
        %v318 = vld [vmem:[%s239 + $0x98] sm:$0xff]
        %v319 = vld [vmem:[%s239 + $0xa0] sm:$0xff]
        %v320 = vld [vmem:[%s239 + $0xa8] sm:$0xff]
        %v321 = vld [vmem:[%s239 + $0xb0] sm:$0xff]
        %v322 = vld [vmem:[%s239 + $0xb8] sm:$0xff]
        %v323 = vld [vmem:[%s239 + $0xc0] sm:$0xff]
        %v324 = vld [vmem:[%s239 + $0xc8] sm:$0xff]
        %v325 = vld [vmem:[%s239 + $0xd0] sm:$0xff]
        %v326 = vld [vmem:[%s239 + $0xd8] sm:$0xff]
        %v327 = vld [vmem:[%s239 + $0xe0] sm:$0xff]
        %v328 = vld [vmem:[%s239 + $0xe8] sm:$0xff]
        %v329 = vld [vmem:[%s239 + $0xf0] sm:$0xff]
        %v330 = vld [vmem:[%s239 + $0xf8] sm:$0xff]
        %v331 = vld [vmem:[#allocation5] sm:$0xf]
        %v332 = vld [vmem:[#allocation5 + $0x4] sm:$0xf]
        %v333 = vld [vmem:[#allocation5 + $0x8] sm:$0xf]
        %v334 = vld [vmem:[#allocation5 + $0xc] sm:$0xf]
        %v335 = vld [vmem:[#allocation5 + $0x10] sm:$0xf]
        %v336 = vld [vmem:[#allocation5 + $0x14] sm:$0xf]
        %v337 = vld [vmem:[#allocation5 + $0x18] sm:$0xf]
        %v338 = vld [vmem:[#allocation5 + $0x1c] sm:$0xf]
        %v339 = vld [vmem:[#allocation5 + $0x20] sm:$0xf]
        %v340 = vld [vmem:[#allocation5 + $0x24] sm:$0xf]
        %v341 = vld [vmem:[#allocation5 + $0x28] sm:$0xf]
        %v342 = vld [vmem:[#allocation5 + $0x2c] sm:$0xf]
        %v343 = vld [vmem:[#allocation5 + $0x30] sm:$0xf]
        %v344 = vld [vmem:[#allocation5 + $0x34] sm:$0xf]
        %v345 = vld [vmem:[#allocation5 + $0x38] sm:$0xf]
        %v346 = vld [vmem:[#allocation5 + $0x3c] sm:$0xf]
        %v347 = vld [vmem:[#allocation5 + $0x40] sm:$0xf]
        %v348 = vld [vmem:[#allocation5 + $0x44] sm:$0xf]
        %v349 = vld [vmem:[#allocation5 + $0x48] sm:$0xf]
        %v350 = vld [vmem:[#allocation5 + $0x4c] sm:$0xf]
        %v351 = vld [vmem:[#allocation5 + $0x50] sm:$0xf]
        %v352 = vld [vmem:[#allocation5 + $0x54] sm:$0xf]
        %v353 = vld [vmem:[#allocation5 + $0x58] sm:$0xf]
        %v354 = vld [vmem:[#allocation5 + $0x5c] sm:$0xf]
        %v355 = vld [vmem:[#allocation5 + $0x60] sm:$0xf]
        %v356 = vld [vmem:[#allocation5 + $0x64] sm:$0xf]
        %v357 = vld [vmem:[#allocation5 + $0x68] sm:$0xf]
        %v358 = vld [vmem:[#allocation5 + $0x6c] sm:$0xf]
        %v359 = vld [vmem:[#allocation5 + $0x70] sm:$0xf]
        %v360 = vld [vmem:[#allocation5 + $0x74] sm:$0xf]
        %v361 = vld [vmem:[#allocation5 + $0x78] sm:$0xf]
        %v362 = vld [vmem:[#allocation5 + $0x7c] sm:$0xf]
        %v363 = vld [vmem:[#allocation5 + $0x80] sm:$0xf]
        %v364 = vld [vmem:[#allocation5 + $0x84] sm:$0xf]
        %v365 = vld [vmem:[#allocation5 + $0x88] sm:$0xf]
        %v366 = vld [vmem:[#allocation5 + $0x8c] sm:$0xf]
        %v367 = vld [vmem:[#allocation5 + $0x90] sm:$0xf]
        %v368 = vld [vmem:[#allocation5 + $0x94] sm:$0xf]
        %v369 = vld [vmem:[#allocation5 + $0x98] sm:$0xf]
        %v370 = vld [vmem:[#allocation5 + $0x9c] sm:$0xf]
        %v371 = vld [vmem:[#allocation5 + $0xa0] sm:$0xf]
        %v372 = vld [vmem:[#allocation5 + $0xa4] sm:$0xf]
        %v373 = vld [vmem:[#allocation5 + $0xa8] sm:$0xf]
        %v374 = vld [vmem:[#allocation5 + $0xac] sm:$0xf]
        %v375 = vld [vmem:[#allocation5 + $0xb0] sm:$0xf]
        %v376 = vld [vmem:[#allocation5 + $0xb4] sm:$0xf]
        %v377 = vld [vmem:[#allocation5 + $0xb8] sm:$0xf]
        %v378 = vld [vmem:[#allocation5 + $0xbc] sm:$0xf]
        %v379 = vld [vmem:[#allocation5 + $0xc0] sm:$0xf]
        %v380 = vld [vmem:[#allocation5 + $0xc4] sm:$0xf]
        %v381 = vld [vmem:[#allocation5 + $0xc8] sm:$0xf]
        %v382 = vld [vmem:[#allocation5 + $0xcc] sm:$0xf]
        %v383 = vld [vmem:[#allocation5 + $0xd0] sm:$0xf]
        %v384 = vld [vmem:[#allocation5 + $0xd4] sm:$0xf]
        %v385 = vld [vmem:[#allocation5 + $0xd8] sm:$0xf]
        %v386 = vld [vmem:[#allocation5 + $0xdc] sm:$0xf]
        %v387 = vld [vmem:[#allocation5 + $0xe0] sm:$0xf]
        %v388 = vld [vmem:[#allocation5 + $0xe4] sm:$0xf]
        %v389 = vld [vmem:[#allocation5 + $0xe8] sm:$0xf]
        %v390 = vld [vmem:[#allocation5 + $0xec] sm:$0xf]
        %v391 = vld [vmem:[#allocation5 + $0xf0] sm:$0xf]
        %v392 = vld [vmem:[#allocation5 + $0xf4] sm:$0xf]
        %v393 = vld [vmem:[#allocation5 + $0xf8] sm:$0xf]
        %v394 = vld [vmem:[#allocation5 + $0xfc] sm:$0xf]
        %v395 = vld [vmem:[%s2] sm:$0x1]
        %v397 = vlaneseq
        %v398 = vshrl.u32 %v397, 7
        %v399 = vsub.s32 0, %v398
        %v400 = vrot.slane %v395, %v399
        %v434 = vunpack.c.l.b16 %v299
        %v435 = vunpack.c.h.b16 %v299
        %v436 = vunpack.c.l.b16 %v300
        %v437 = vunpack.c.h.b16 %v300
        %v438 = vunpack.c.l.b16 %v301
        %v439 = vunpack.c.h.b16 %v301
        %v440 = vunpack.c.l.b16 %v302
        %v441 = vunpack.c.h.b16 %v302
        %v442 = vunpack.c.l.b16 %v303
        %v443 = vunpack.c.h.b16 %v303
        %v444 = vunpack.c.l.b16 %v304
        %v445 = vunpack.c.h.b16 %v304
        %v446 = vunpack.c.l.b16 %v305
        %v447 = vunpack.c.h.b16 %v305
        %v448 = vunpack.c.l.b16 %v306
        %v449 = vunpack.c.h.b16 %v306
        %v450 = vunpack.c.l.b16 %v307
        %v451 = vunpack.c.h.b16 %v307
        %v452 = vunpack.c.l.b16 %v308
        %v453 = vunpack.c.h.b16 %v308
        %v454 = vunpack.c.l.b16 %v309
        %v455 = vunpack.c.h.b16 %v309
        %v456 = vunpack.c.l.b16 %v310
        %v457 = vunpack.c.h.b16 %v310
        %v458 = vunpack.c.l.b16 %v311
        %v459 = vunpack.c.h.b16 %v311
        %v460 = vunpack.c.l.b16 %v312
        %v461 = vunpack.c.h.b16 %v312
        %v462 = vunpack.c.l.b16 %v313
        %v463 = vunpack.c.h.b16 %v313
        %v464 = vunpack.c.l.b16 %v314
        %v465 = vunpack.c.h.b16 %v314
        %v466 = vunpack.c.l.b16 %v315
        %v467 = vunpack.c.h.b16 %v315
        %v468 = vunpack.c.l.b16 %v316
        %v469 = vunpack.c.h.b16 %v316
        %v470 = vunpack.c.l.b16 %v317
        %v471 = vunpack.c.h.b16 %v317
        %v472 = vunpack.c.l.b16 %v318
        %v473 = vunpack.c.h.b16 %v318
        %v474 = vunpack.c.l.b16 %v319
        %v475 = vunpack.c.h.b16 %v319
        %v476 = vunpack.c.l.b16 %v320
        %v477 = vunpack.c.h.b16 %v320
        %v478 = vunpack.c.l.b16 %v321
        %v479 = vunpack.c.h.b16 %v321
        %v480 = vunpack.c.l.b16 %v322
        %v481 = vunpack.c.h.b16 %v322
        %v482 = vunpack.c.l.b16 %v323
        %v483 = vunpack.c.h.b16 %v323
        %v484 = vunpack.c.l.b16 %v324
        %v485 = vunpack.c.h.b16 %v324
        %v486 = vunpack.c.l.b16 %v325
        %v487 = vunpack.c.h.b16 %v325
        %v488 = vunpack.c.l.b16 %v326
        %v489 = vunpack.c.h.b16 %v326
        %v490 = vunpack.c.l.b16 %v327
        %v491 = vunpack.c.h.b16 %v327
        %v492 = vunpack.c.l.b16 %v328
        %v493 = vunpack.c.h.b16 %v328
        %v494 = vunpack.c.l.b16 %v329
        %v495 = vunpack.c.h.b16 %v329
        %v496 = vunpack.c.l.b16 %v330
        %v497 = vunpack.c.h.b16 %v330
        %v498 = vpack.c.b16 %v438, %v434
        %v499 = vpack.c.b16 %v439, %v435
        %v500 = vpack.c.b16 %v440, %v436
        %v501 = vpack.c.b16 %v441, %v437
        %v502 = vpack.c.b16 %v446, %v442
        %v503 = vpack.c.b16 %v447, %v443
        %v504 = vpack.c.b16 %v448, %v444
        %v505 = vpack.c.b16 %v449, %v445
        %v506 = vpack.c.b16 %v454, %v450
        %v507 = vpack.c.b16 %v455, %v451
        %v508 = vpack.c.b16 %v456, %v452
        %v509 = vpack.c.b16 %v457, %v453
        %v510 = vpack.c.b16 %v462, %v458
        %v511 = vpack.c.b16 %v463, %v459
        %v512 = vpack.c.b16 %v464, %v460
        %v513 = vpack.c.b16 %v465, %v461
        %v514 = vpack.c.b16 %v470, %v466
        %v515 = vpack.c.b16 %v471, %v467
        %v516 = vpack.c.b16 %v472, %v468
        %v517 = vpack.c.b16 %v473, %v469
        %v518 = vpack.c.b16 %v478, %v474
        %v519 = vpack.c.b16 %v479, %v475
        %v520 = vpack.c.b16 %v480, %v476
        %v521 = vpack.c.b16 %v481, %v477
        %v522 = vpack.c.b16 %v486, %v482
        %v523 = vpack.c.b16 %v487, %v483
        %v524 = vpack.c.b16 %v488, %v484
        %v525 = vpack.c.b16 %v489, %v485
        %v526 = vpack.c.b16 %v494, %v490
        %v527 = vpack.c.b16 %v495, %v491
        %v528 = vpack.c.b16 %v496, %v492
        %v529 = vpack.c.b16 %v497, %v493
        %v626 = vunpack.c.l.b16 %v331
        %v627 = vunpack.c.l.b16 %v332
        %v628 = vunpack.c.l.b16 %v333
        %v629 = vunpack.c.l.b16 %v334
        %v630 = vunpack.c.l.b16 %v335
        %v631 = vunpack.c.l.b16 %v336
        %v632 = vunpack.c.l.b16 %v337
        %v633 = vunpack.c.l.b16 %v338
        %v634 = vunpack.c.l.b16 %v339
        %v635 = vunpack.c.l.b16 %v340
        %v636 = vunpack.c.l.b16 %v341
        %v637 = vunpack.c.l.b16 %v342
        %v638 = vunpack.c.l.b16 %v343
        %v639 = vunpack.c.l.b16 %v344
        %v640 = vunpack.c.l.b16 %v345
        %v641 = vunpack.c.l.b16 %v346
        %v642 = vunpack.c.l.b16 %v347
        %v643 = vunpack.c.l.b16 %v348
        %v644 = vunpack.c.l.b16 %v349
        %v645 = vunpack.c.l.b16 %v350
        %v646 = vunpack.c.l.b16 %v351
        %v647 = vunpack.c.l.b16 %v352
        %v648 = vunpack.c.l.b16 %v353
        %v649 = vunpack.c.l.b16 %v354
        %v650 = vunpack.c.l.b16 %v355
        %v651 = vunpack.c.l.b16 %v356
        %v652 = vunpack.c.l.b16 %v357
        %v653 = vunpack.c.l.b16 %v358
        %v654 = vunpack.c.l.b16 %v359
        %v655 = vunpack.c.l.b16 %v360
        %v656 = vunpack.c.l.b16 %v361
        %v657 = vunpack.c.l.b16 %v362
        %v658 = vunpack.c.l.b16 %v363
        %v659 = vunpack.c.l.b16 %v364
        %v660 = vunpack.c.l.b16 %v365
        %v661 = vunpack.c.l.b16 %v366
        %v662 = vunpack.c.l.b16 %v367
        %v663 = vunpack.c.l.b16 %v368
        %v664 = vunpack.c.l.b16 %v369
        %v665 = vunpack.c.l.b16 %v370
        %v666 = vunpack.c.l.b16 %v371
        %v667 = vunpack.c.l.b16 %v372
        %v668 = vunpack.c.l.b16 %v373
        %v669 = vunpack.c.l.b16 %v374
        %v670 = vunpack.c.l.b16 %v375
        %v671 = vunpack.c.l.b16 %v376
        %v672 = vunpack.c.l.b16 %v377
        %v673 = vunpack.c.l.b16 %v378
        %v674 = vunpack.c.l.b16 %v379
        %v675 = vunpack.c.l.b16 %v380
        %v676 = vunpack.c.l.b16 %v381
        %v677 = vunpack.c.l.b16 %v382
        %v678 = vunpack.c.l.b16 %v383
        %v679 = vunpack.c.l.b16 %v384
        %v680 = vunpack.c.l.b16 %v385
        %v681 = vunpack.c.l.b16 %v386
        %v682 = vunpack.c.l.b16 %v387
        %v683 = vunpack.c.l.b16 %v388
        %v684 = vunpack.c.l.b16 %v389
        %v685 = vunpack.c.l.b16 %v390
        %v686 = vunpack.c.l.b16 %v391
        %v687 = vunpack.c.l.b16 %v392
        %v688 = vunpack.c.l.b16 %v393
        %v689 = vunpack.c.l.b16 %v394
        %v690 = vpack.c.b16 %v627, %v626
        %v691 = vpack.c.b16 %v629, %v628
        %v692 = vpack.c.b16 %v631, %v630
        %v693 = vpack.c.b16 %v633, %v632
        %v694 = vpack.c.b16 %v635, %v634
        %v695 = vpack.c.b16 %v637, %v636
        %v696 = vpack.c.b16 %v639, %v638
        %v697 = vpack.c.b16 %v641, %v640
        %v698 = vpack.c.b16 %v643, %v642
        %v699 = vpack.c.b16 %v645, %v644
        %v700 = vpack.c.b16 %v647, %v646
        %v701 = vpack.c.b16 %v649, %v648
        %v702 = vpack.c.b16 %v651, %v650
        %v703 = vpack.c.b16 %v653, %v652
        %v704 = vpack.c.b16 %v655, %v654
        %v705 = vpack.c.b16 %v657, %v656
        %v706 = vpack.c.b16 %v659, %v658
        %v707 = vpack.c.b16 %v661, %v660
        %v708 = vpack.c.b16 %v663, %v662
        %v709 = vpack.c.b16 %v665, %v664
        %v710 = vpack.c.b16 %v667, %v666
        %v711 = vpack.c.b16 %v669, %v668
        %v712 = vpack.c.b16 %v671, %v670
        %v713 = vpack.c.b16 %v673, %v672
        %v714 = vpack.c.b16 %v675, %v674
        %v715 = vpack.c.b16 %v677, %v676
        %v716 = vpack.c.b16 %v679, %v678
        %v717 = vpack.c.b16 %v681, %v680
        %v718 = vpack.c.b16 %v683, %v682
        %v719 = vpack.c.b16 %v685, %v684
        %v720 = vpack.c.b16 %v687, %v686
        %v721 = vpack.c.b16 %v689, %v688
        %754 = vmatprep.subr.bf16.mxu0 0
        %755 = vmatpush1.bf16.msra.mxu0 %v690
        %756 = vmatprep.subr.bf16.mxu0 0
        %757 = vmatpush1.bf16.msra.mxu0 %v691
        %758 = vmatprep.subr.bf16.mxu0 0
        %759 = vmatpush1.bf16.msra.mxu0 %v692
        %760 = vmatprep.subr.bf16.mxu0 0
        %761 = vmatpush1.bf16.msra.mxu0 %v693
        %762 = vmatprep.subr.bf16.mxu0 0
        %763 = vmatpush1.bf16.msra.mxu0 %v694
        %764 = vmatprep.subr.bf16.mxu0 0
        %765 = vmatpush1.bf16.msra.mxu0 %v695
        %766 = vmatprep.subr.bf16.mxu0 0
        %767 = vmatpush1.bf16.msra.mxu0 %v696
        %768 = vmatprep.subr.bf16.mxu0 0
        %769 = vmatpush1.bf16.msra.mxu0 %v697
        %770 = vmatprep.subr.bf16.mxu0 0
        %771 = vmatpush1.bf16.msra.mxu0 %v698
        %772 = vmatprep.subr.bf16.mxu0 0
        %773 = vmatpush1.bf16.msra.mxu0 %v699
        %774 = vmatprep.subr.bf16.mxu0 0
        %775 = vmatpush1.bf16.msra.mxu0 %v700
        %776 = vmatprep.subr.bf16.mxu0 0
        %777 = vmatpush1.bf16.msra.mxu0 %v701
        %778 = vmatprep.subr.bf16.mxu0 0
        %779 = vmatpush1.bf16.msra.mxu0 %v702
        %780 = vmatprep.subr.bf16.mxu0 0
        %781 = vmatpush1.bf16.msra.mxu0 %v703
        %782 = vmatprep.subr.bf16.mxu0 0
        %783 = vmatpush1.bf16.msra.mxu0 %v704
        %784 = vmatprep.subr.bf16.mxu0 0
        %785 = vmatpush1.bf16.msra.mxu0 %v705
        %786 = vmatprep.mubr.bf16.mxu0 %v499
        %787 = vmatmul.mubr.bf16.gmra.mrb[0].mxu0 %v498
        %v788 = vpop.f32.mrb[0].mxu0
        %v789 = vadd.f32 %v400, %v788
        %v790 = vpop.f32.mrb[0].mxu0
        %v791 = vpop.f32.mrb[0].mxu0
        %v792 = vadd.f32 %v400, %v791
        %v793 = vpop.f32.mrb[0].mxu0
        %794 = vmatprep.mubr.bf16.mxu0 %v503
        %795 = vmatmul.mubr.bf16.gmra.mrb[0].mxu0 %v502
        %v796 = vpop.f32.mrb[0].mxu0
        %v797 = vadd.f32 %v400, %v796
        %v798 = vpop.f32.mrb[0].mxu0
        %v799 = vpop.f32.mrb[0].mxu0
        %v800 = vadd.f32 %v400, %v799
        %v801 = vpop.f32.mrb[0].mxu0
        %802 = vmatprep.mubr.bf16.mxu0 %v507
        %803 = vmatmul.mubr.bf16.gmra.mrb[0].mxu0 %v506
        %v804 = vpop.f32.mrb[0].mxu0
        %v805 = vadd.f32 %v400, %v804
        %v806 = vpop.f32.mrb[0].mxu0
        %v807 = vpop.f32.mrb[0].mxu0
        %v808 = vadd.f32 %v400, %v807
        %v809 = vpop.f32.mrb[0].mxu0
        %810 = vmatprep.mubr.bf16.mxu0 %v511
        %811 = vmatmul.mubr.bf16.gmra.mrb[0].mxu0 %v510
        %v812 = vpop.f32.mrb[0].mxu0
        %v813 = vadd.f32 %v400, %v812
        %v814 = vpop.f32.mrb[0].mxu0
        %v815 = vpop.f32.mrb[0].mxu0
        %v816 = vadd.f32 %v400, %v815
        %v817 = vpop.f32.mrb[0].mxu0
        %818 = vmatprep.mubr.bf16.mxu0 %v515
        %819 = vmatmul.mubr.bf16.gmra.mrb[0].mxu0 %v514
        %v820 = vpop.f32.mrb[0].mxu0
        %v821 = vadd.f32 %v400, %v820
        %v822 = vpop.f32.mrb[0].mxu0
        %v823 = vpop.f32.mrb[0].mxu0
        %v824 = vadd.f32 %v400, %v823
        %v825 = vpop.f32.mrb[0].mxu0
        %826 = vmatprep.mubr.bf16.mxu0 %v519
        %827 = vmatmul.mubr.bf16.gmra.mrb[0].mxu0 %v518
        %v828 = vpop.f32.mrb[0].mxu0
        %v829 = vadd.f32 %v400, %v828
        %v830 = vpop.f32.mrb[0].mxu0
        %v831 = vpop.f32.mrb[0].mxu0
        %v832 = vadd.f32 %v400, %v831
        %v833 = vpop.f32.mrb[0].mxu0
        %834 = vmatprep.mubr.bf16.mxu0 %v523
        %835 = vmatmul.mubr.bf16.gmra.mrb[0].mxu0 %v522
        %v836 = vpop.f32.mrb[0].mxu0
        %v837 = vadd.f32 %v400, %v836
        %v838 = vpop.f32.mrb[0].mxu0
        %v839 = vpop.f32.mrb[0].mxu0
        %v840 = vadd.f32 %v400, %v839
        %v841 = vpop.f32.mrb[0].mxu0
        %842 = vmatprep.mubr.bf16.mxu0 %v527
        %843 = vmatmul.mubr.bf16.gmra.mrb[0].mxu0 %v526
        %v844 = vpop.f32.mrb[0].mxu0
        %v845 = vadd.f32 %v400, %v844
        %v846 = vpop.f32.mrb[0].mxu0
        %v847 = vpop.f32.mrb[0].mxu0
        %v848 = vadd.f32 %v400, %v847
        %v849 = vpop.f32.mrb[0].mxu0
        %850 = vdwg.mxu0
        %851 = vmatprep.subr.bf16.mxu0 0
        %852 = vmatpush1.bf16.msra.mxu0 %v706
        %853 = vmatprep.subr.bf16.mxu0 0
        %854 = vmatpush1.bf16.msra.mxu0 %v707
        %855 = vmatprep.subr.bf16.mxu0 0
        %856 = vmatpush1.bf16.msra.mxu0 %v708
        %857 = vmatprep.subr.bf16.mxu0 0
        %858 = vmatpush1.bf16.msra.mxu0 %v709
        %859 = vmatprep.subr.bf16.mxu0 0
        %860 = vmatpush1.bf16.msra.mxu0 %v710
        %861 = vmatprep.subr.bf16.mxu0 0
        %862 = vmatpush1.bf16.msra.mxu0 %v711
        %863 = vmatprep.subr.bf16.mxu0 0
        %864 = vmatpush1.bf16.msra.mxu0 %v712
        %865 = vmatprep.subr.bf16.mxu0 0
        %866 = vmatpush1.bf16.msra.mxu0 %v713
        %867 = vmatprep.subr.bf16.mxu0 0
        %868 = vmatpush1.bf16.msra.mxu0 %v714
        %869 = vmatprep.subr.bf16.mxu0 0
        %870 = vmatpush1.bf16.msra.mxu0 %v715
        %871 = vmatprep.subr.bf16.mxu0 0
        %872 = vmatpush1.bf16.msra.mxu0 %v716
        %873 = vmatprep.subr.bf16.mxu0 0
        %874 = vmatpush1.bf16.msra.mxu0 %v717
        %875 = vmatprep.subr.bf16.mxu0 0
        %876 = vmatpush1.bf16.msra.mxu0 %v718
        %877 = vmatprep.subr.bf16.mxu0 0
        %878 = vmatpush1.bf16.msra.mxu0 %v719
        %879 = vmatprep.subr.bf16.mxu0 0
        %880 = vmatpush1.bf16.msra.mxu0 %v720
        %881 = vmatprep.subr.bf16.mxu0 0
        %882 = vmatpush1.bf16.msra.mxu0 %v721
        %883 = vmatprep.mubr.bf16.mxu0 %v501
        %884 = vmatmul.mubr.bf16.gmra.mrb[0].mxu0 %v500
        %v885 = vpop.f32.mrb[0].mxu0
        %v886 = vadd.f32 %v789, %v885
        %v887 = vpop.f32.mrb[0].mxu0
        %v888 = vpop.f32.mrb[0].mxu0
        %v889 = vadd.f32 %v792, %v888
        %v890 = vpop.f32.mrb[0].mxu0
        %891 = vmatprep.mubr.bf16.mxu0 %v505
        %892 = vmatmul.mubr.bf16.gmra.mrb[0].mxu0 %v504
        %v893 = vpop.f32.mrb[0].mxu0
        %v894 = vadd.f32 %v797, %v893
        %v895 = vpop.f32.mrb[0].mxu0
        %v896 = vpop.f32.mrb[0].mxu0
        %v897 = vadd.f32 %v800, %v896
        %v898 = vpop.f32.mrb[0].mxu0
        %899 = vmatprep.mubr.bf16.mxu0 %v509
        %900 = vmatmul.mubr.bf16.gmra.mrb[0].mxu0 %v508
        %v901 = vpop.f32.mrb[0].mxu0
        %v902 = vadd.f32 %v805, %v901
        %v903 = vpop.f32.mrb[0].mxu0
        %v904 = vpop.f32.mrb[0].mxu0
        %v905 = vadd.f32 %v808, %v904
        %v906 = vpop.f32.mrb[0].mxu0
        %907 = vmatprep.mubr.bf16.mxu0 %v513
        %908 = vmatmul.mubr.bf16.gmra.mrb[0].mxu0 %v512
        %v909 = vpop.f32.mrb[0].mxu0
        %v910 = vadd.f32 %v813, %v909
        %v911 = vpop.f32.mrb[0].mxu0
        %v912 = vpop.f32.mrb[0].mxu0
        %v913 = vadd.f32 %v816, %v912
        %v914 = vpop.f32.mrb[0].mxu0
        %915 = vmatprep.mubr.bf16.mxu0 %v517
        %916 = vmatmul.mubr.bf16.gmra.mrb[0].mxu0 %v516
        %v917 = vpop.f32.mrb[0].mxu0
        %v918 = vadd.f32 %v821, %v917
        %v919 = vpop.f32.mrb[0].mxu0
        %v920 = vpop.f32.mrb[0].mxu0
        %v921 = vadd.f32 %v824, %v920
        %v922 = vpop.f32.mrb[0].mxu0
        %923 = vmatprep.mubr.bf16.mxu0 %v521
        %924 = vmatmul.mubr.bf16.gmra.mrb[0].mxu0 %v520
        %v925 = vpop.f32.mrb[0].mxu0
        %v926 = vadd.f32 %v829, %v925
        %v927 = vpop.f32.mrb[0].mxu0
        %v928 = vpop.f32.mrb[0].mxu0
        %v929 = vadd.f32 %v832, %v928
        %v930 = vpop.f32.mrb[0].mxu0
        %931 = vmatprep.mubr.bf16.mxu0 %v525
        %932 = vmatmul.mubr.bf16.gmra.mrb[0].mxu0 %v524
        %v933 = vpop.f32.mrb[0].mxu0
        %v934 = vadd.f32 %v837, %v933
        %v935 = vpop.f32.mrb[0].mxu0
        %v936 = vpop.f32.mrb[0].mxu0
        %v937 = vadd.f32 %v840, %v936
        %v938 = vpop.f32.mrb[0].mxu0
        %939 = vmatprep.mubr.bf16.mxu0 %v529
        %940 = vmatmul.mubr.bf16.gmra.mrb[0].mxu0 %v528
        %v941 = vpop.f32.mrb[0].mxu0
        %v942 = vadd.f32 %v845, %v941
        %v943 = vpop.f32.mrb[0].mxu0
        %v944 = vpop.f32.mrb[0].mxu0
        %v945 = vadd.f32 %v848, %v944
        %v946 = vpop.f32.mrb[0].mxu0
        %947 = vdwg.mxu0
        %v948 = vld [vmem:[%s252] sm:$0xff]
        %v949 = vld [vmem:[%s252 + $0x8] sm:$0xff]
        %v950 = vld [vmem:[%s252 + $0x10] sm:$0xff]
        %v951 = vld [vmem:[%s252 + $0x18] sm:$0xff]
        %v952 = vld [vmem:[%s252 + $0x20] sm:$0xff]
        %v953 = vld [vmem:[%s252 + $0x28] sm:$0xff]
        %v954 = vld [vmem:[%s252 + $0x30] sm:$0xff]
        %v955 = vld [vmem:[%s252 + $0x38] sm:$0xff]
        %v956 = vld [vmem:[%s252 + $0x40] sm:$0xff]
        %v957 = vld [vmem:[%s252 + $0x48] sm:$0xff]
        %v958 = vld [vmem:[%s252 + $0x50] sm:$0xff]
        %v959 = vld [vmem:[%s252 + $0x58] sm:$0xff]
        %v960 = vld [vmem:[%s252 + $0x60] sm:$0xff]
        %v961 = vld [vmem:[%s252 + $0x68] sm:$0xff]
        %v962 = vld [vmem:[%s252 + $0x70] sm:$0xff]
        %v963 = vld [vmem:[%s252 + $0x78] sm:$0xff]
        %v964 = vadd.f32 %v886, %v948
        %v965 = vadd.f32 %v889, %v949
        %v966 = vadd.f32 %v894, %v950
        %v967 = vadd.f32 %v897, %v951
        %v968 = vadd.f32 %v902, %v952
        %v969 = vadd.f32 %v905, %v953
        %v970 = vadd.f32 %v910, %v954
        %v971 = vadd.f32 %v913, %v955
        %v972 = vadd.f32 %v918, %v956
        %v973 = vadd.f32 %v921, %v957
        %v974 = vadd.f32 %v926, %v958
        %v975 = vadd.f32 %v929, %v959
        %v976 = vadd.f32 %v934, %v960
        %v977 = vadd.f32 %v937, %v961
        %v978 = vadd.f32 %v942, %v962
        %v979 = vadd.f32 %v945, %v963
        %980 = vst [vmem:[%s281] sm:$0xff] %v964
        %981 = vst [vmem:[%s281 + $0x8] sm:$0xff] %v965
        %982 = vst [vmem:[%s281 + $0x10] sm:$0xff] %v966
        %983 = vst [vmem:[%s281 + $0x18] sm:$0xff] %v967
        %984 = vst [vmem:[%s281 + $0x20] sm:$0xff] %v968
        %985 = vst [vmem:[%s281 + $0x28] sm:$0xff] %v969
        %986 = vst [vmem:[%s281 + $0x30] sm:$0xff] %v970
        %987 = vst [vmem:[%s281 + $0x38] sm:$0xff] %v971
        %988 = vst [vmem:[%s281 + $0x40] sm:$0xff] %v972
        %989 = vst [vmem:[%s281 + $0x48] sm:$0xff] %v973
        %990 = vst [vmem:[%s281 + $0x50] sm:$0xff] %v974
        %991 = vst [vmem:[%s281 + $0x58] sm:$0xff] %v975
        %992 = vst [vmem:[%s281 + $0x60] sm:$0xff] %v976
        %993 = vst [vmem:[%s281 + $0x68] sm:$0xff] %v977
        %994 = vst [vmem:[%s281 + $0x70] sm:$0xff] %v978
        %995 = vst [vmem:[%s281 + $0x78] sm:$0xff] %v979
        %s996 = sand.u32 %s124, 1
        %s997 = scalar_lea.sflag [#allocation4], %s996
        %s998 = sand.u32 %s124, 1
        %s999 = smul.addr %s998, 128
        %s1000 = scalar_lea.vmem [#allocation8], %s999
        // Predicated region
        $region49: #{tpu_custom_call.1} parent=35 // pred_check
          %p1001 = pneg %p134
        $region50: #{tpu_custom_call.1} parent=35 // pred_check_branch
          %1003 = sbr.rel (%p1001) target = $region52
        $region51: #{tpu_custom_call.1} parent=35 // pred_region
          %s1004 = smul.u32 16, %s22
          %s1005 = ssub.s32 63, %s1004
          %p1006 = scmp.lt.s32.totalorder %s1005, 16
          %s1007 = scalar_select %p1006, %s1005, 16
          %s1008 = smul.u32 128, %s1007
          %s1010 = ssub.s32 2048, %s1008
          %1011 = vsyncadd %s997, %s1010
          %p1012 = scmp.ne.s32.totalorder 0, %s1008
          %s1013 = smul.addr %s1004, 128
          %s1014 = scalar_lea.hbm %s4, %s1013
          %s1015 = smul.u32 8, %s1007
          %s1016 = sshll.u32 %s1000, 4
          %s1017 = int_to_ptr.vmem [resolvable:$true] %s1016
          %s1018 = sshll.u32 %s1015, 4
          %1022 = dma.vmem_to_hbm [thread:$0]  (%p1012), %s1017, %s1018, %s1014, %s997, 128, 128, 8
        $region52: #{tpu_custom_call.1} parent=35 // pred_fallthru
          _
      $region36: #{tpu_custom_call.1} parent=5 // pred_fallthru
        _
      %p1023 = scmp.le.s32.totalorder 2, %s17
      // Predicated region
      $region53: #{tpu_custom_call.1} parent=5 // pred_check
        %p1024 = pneg %p1023
      $region54: #{tpu_custom_call.1} parent=5 // pred_check_branch
        %1026 = sbr.rel (%p1024) target = $region56
      $region55: #{tpu_custom_call.1} parent=5 // pred_region
        %s1027 = ssub.s32 %s17, 2
        // Predicated region
        $region57: #{tpu_custom_call.1} parent=55 // pred_check
          %p1028 = pneg %p140
        $region58: #{tpu_custom_call.1} parent=55 // pred_check_branch
          %1030 = sbr.rel (%p1028) target = $region60
        $region59: #{tpu_custom_call.1} parent=55 // pred_region
          %s1031 = sand.u32 %s125, 1
          %s1032 = scalar_lea.sflag [#allocation4], %s1031
          %s1033 = sand.u32 %s125, 1
          %s1034 = smul.addr %s1033, 128
          %s1035 = scalar_lea.vmem [#allocation8], %s1034
          %1036 = dma.done %s1032, 2048
        $region60: #{tpu_custom_call.1} parent=55 // pred_fallthru
          _
      $region56: #{tpu_custom_call.1} parent=5 // pred_fallthru
        _
    $region6: #{tpu_custom_call.1} parent=1 // loop_footer
      %s21 = sadd.s32 1, %s17
    $region7: #{tpu_custom_call.1} parent=1 // loop_footer_branch
      %16 = sbr.rel target = $region3
    $region8: #{tpu_custom_call.1} parent=1 // loop_exit
      _
    %1037 = vsyncpa [#allocation3], 1
    %s1038 = scalar_lea.sflag [#allocation3], 1
    %1039 = vsyncpa %s1038, 1
    %1040 = vsyncpa [#allocation6], 1
    %1041 = vsyncpa [#allocation4], 1
    %s1042 = scalar_lea.sflag [#allocation4], 1
    %1043 = vsyncpa %s1042, 1

</llo_original>
